<compile_context>
chip_gen: v7x
topology: tpu7x:2x2x1
jax: 0.10.0
libtpu: 0.0.40
codegen_flags: <defaults>
</compile_context>

<pallas_src>
import functools

import jax
import jax.numpy as jnp
from jax.experimental import pallas as pl
from jax.experimental.pallas import tpu as pltpu


# ---------------------------------------------------------------------------
# Kernel
# ---------------------------------------------------------------------------
def _generator_kernel(x_ref, y_ref, eps_ref, params_ref, out_ref, *, z_dim, y_dim):
    """One batch tile:  out = x + [eps/||eps||, y] @ W^T + b.

    params_ref is the packed parameter block:
      rows [0, z_dim)                 : Wz^T   (z_dim, z_dim)
      rows [z_dim, z_dim + y_dim)     : Wy^T   (y_dim, z_dim)
      row  z_dim + y_dim              : bias   (1, z_dim)
    """
    eps = eps_ref[...]                                                # (tile, z_dim) f32

    # Row-wise L2 normalization; rsqrt lowers to the (otherwise idle) EUP slot.
    # An all-zero row yields inf/NaN, exactly like the PyTorch z / z.norm(2, dim=1).
    sq_sum = jnp.sum(eps * eps, axis=1, keepdims=True)                # (tile, 1)
    z_n = eps * jax.lax.rsqrt(sq_sum)

    # z-term: single MXU matmul against the grid-resident packed weights.
    wz = params_ref[pl.ds(0, z_dim), :]                               # (z_dim, z_dim)
    o = jnp.dot(z_n, wz, preferred_element_type=jnp.float32)

    # Bias added once.
    o = o + params_ref[pl.ds(z_dim + y_dim, 1), :]                    # (1, z_dim) broadcast

    # y-term: y_priv_dim is tiny (one-hot labels) -> unrolled VPU broadcast
    # multiply-adds; avoids a second MXU push/drain on every generation.
    y = y_ref[...]
    for j in range(y_dim):                                            # static, small trip count
        o = o + y[:, j:j + 1] * params_ref[pl.ds(z_dim + j, 1), :]

    out_ref[...] = (x_ref[...] + o).astype(out_ref.dtype)             # residual add


# ---------------------------------------------------------------------------
# Host-side wrappers
# ---------------------------------------------------------------------------
def prepare_generator_params(weight, bias):
    """One-time preprocessing of the nn.Linear parameters (off the per-call path).

    weight: (z_dim, z_dim + y_priv_dim)  PyTorch (out, in) layout
    bias:   (z_dim,)
    Returns a single packed f32 array of shape (z_dim + y_priv_dim + 1, z_dim):
      [Wz^T ; Wy^T ; bias]  -> one DMA, sliced with zero-cost static views in-kernel.
    """
    weight = jnp.asarray(weight, dtype=jnp.float32)
    bias = jnp.asarray(bias, dtype=jnp.float32)
    w_t = weight.T                                                    # (z_dim + y_dim, z_dim)
    return jnp.concatenate([w_t, bias.reshape(1, -1)], axis=0)


def generator_forward(x, y, eps, packed_params, *, row_tile=256, alias_x=False):
    """
    x:             (B, z_dim)       f32 input features
    y:             (B, y_priv_dim)  f32 one-hot private labels
    eps:           (B, z_dim)       f32 standard-normal noise (host RNG, z = eps since m=0, v=1)
    packed_params: (z_dim + y_priv_dim + 1, z_dim) from prepare_generator_params
    """
    B, z_dim = x.shape
    y_dim = y.shape[1]
    p_rows = z_dim + y_dim + 1
    assert packed_params.shape == (p_rows, z_dim)
    assert eps.shape == (B, z_dim)

    # Batch tiling: a row tile that is a multiple of 8 when the batch divides it;
    # otherwise fall back to one full-batch tile (block == full array is always legal).
    if B >= row_tile and B % row_tile == 0:
        tile = row_tile
    else:
        tile = B
    grid = (B // tile,)

    row_spec = lambda shp: pl.BlockSpec(shp, lambda i: (i, 0))

    flops = 2 * B * z_dim * z_dim + 2 * B * y_dim * z_dim + 5 * B * z_dim
    bytes_accessed = 4 * (3 * B * z_dim + B * y_dim + p_rows * z_dim)

    return pl.pallas_call(
        functools.partial(_generator_kernel, z_dim=z_dim, y_dim=y_dim),
        out_shape=jax.ShapeDtypeStruct((B, z_dim), x.dtype),
        grid_spec=pltpu.PrefetchScalarGridSpec(
            num_scalar_prefetch=0,
            grid=grid,
            in_specs=[
                row_spec((tile, z_dim)),                               # x (batch-tiled)
                row_spec((tile, y_dim)),                               # y (batch-tiled)
                row_spec((tile, z_dim)),                               # eps (batch-tiled)
                pl.BlockSpec((p_rows, z_dim), lambda i: (0, 0)),       # packed params, grid-resident
            ],
            out_specs=row_spec((tile, z_dim)),
        ),
        compiler_params=pltpu.CompilerParams(
            # Batch axis is independent -> shards across v7x's 2 TCs; no-op on v5e/v6e.
            dimension_semantics=("parallel",),
        ),
        cost_estimate=pl.CostEstimate(flops=flops, transcendentals=B,
                                      bytes_accessed=bytes_accessed),
        # Optional: drop the extra HBM output allocation when callers don't reuse x.
        input_output_aliases=({0: 0} if alias_x else {}),
    )(x, y, eps, packed_params)


def reference_forward(x, y, eps, weight, bias):
    """Plain JAX reference mirroring the PyTorch module, given the noise eps."""
    z_n = eps / jnp.linalg.norm(eps, axis=1, keepdims=True)
    xy = jnp.concatenate([z_n, y], axis=1)
    return x + xy @ weight.T + bias


# ---------------------------------------------------------------------------
# Test
# ---------------------------------------------------------------------------
if __name__ == "__main__":
    B = 2
    Z_DIM = 24
    Y_PRIV_DIM = 2

    key = jax.random.PRNGKey(0)
    k_x, k_y, k_w, k_b, k_eps = jax.random.split(key, 5)

    x = jax.random.normal(k_x, (B, Z_DIM), dtype=jnp.float32)
    y_idx = jax.random.randint(k_y, (B,), 0, Y_PRIV_DIM)
    y = jax.nn.one_hot(y_idx, Y_PRIV_DIM, dtype=jnp.float32)

    # Deterministic Linear(z_dim + y_priv_dim -> z_dim) params (PyTorch (out, in) layout).
    fan_in = Z_DIM + Y_PRIV_DIM
    bound = 1.0 / jnp.sqrt(fan_in)
    weight = jax.random.uniform(k_w, (Z_DIM, fan_in), minval=-bound, maxval=bound,
                                dtype=jnp.float32)
    bias = jax.random.uniform(k_b, (Z_DIM,), minval=-bound, maxval=bound,
                              dtype=jnp.float32)

    # One-time parameter packing (off the per-call path).
    packed_params = prepare_generator_params(weight, bias)

    # Per-call noise draw on the host (same distribution as torch.randn_like).
    eps = jax.random.normal(k_eps, (B, Z_DIM), dtype=jnp.float32)

    out = generator_forward(x, y, eps, packed_params)
    out = jax.block_until_ready(out)

    ref = reference_forward(x, y, eps, weight, bias)
    assert out.shape == (B, Z_DIM)
    assert bool(jnp.all(jnp.isfinite(out)))
    assert jnp.allclose(out, ref, atol=1e-5, rtol=1e-5), "mismatch vs reference"

    print("KERNEL_OK")
</pallas_src>

<mosaic_0001>
module attributes {stable_mosaic.version = 11 : i64} {
  func.func @_generator_kernel(%arg0: i32, %arg1: memref<2x24xf32, #tpu.memory_space<vmem>>, %arg2: memref<2x2xf32, #tpu.memory_space<vmem>>, %arg3: memref<2x24xf32, #tpu.memory_space<vmem>>, %arg4: memref<27x24xf32, #tpu.memory_space<vmem>>, %arg5: memref<2x24xf32, #tpu.memory_space<vmem>>) attributes {dimension_semantics = [#tpu.dimension_semantics<parallel>], iteration_bounds = array<i64: 1>, scalar_prefetch = 0 : i64, scratch_operands = 0 : i64, tpu.core_type = #tpu.core_type<tc>, window_params = [{transform_indices = @transform_0, window_bounds = array<i64: 2, 24>}, {transform_indices = @transform_1, window_bounds = array<i64: 2, 2>}, {transform_indices = @transform_2, window_bounds = array<i64: 2, 24>}, {pipeline_mode = #tpu.pipeline_mode<synchronous>, transform_indices = @transform_3, window_bounds = array<i64: 27, 24>}, {transform_indices = @transform_4, window_bounds = array<i64: 2, 24>}]} {
    %c0 = arith.constant 0 : index
    %c0_0 = arith.constant 0 : index
    %0 = vector.load %arg3[%c0, %c0_0] : memref<2x24xf32, #tpu.memory_space<vmem>>, vector<2x24xf32>
    %1 = arith.mulf %0, %0 : vector<2x24xf32>
    %cst = arith.constant dense<0.000000e+00> : vector<2xf32>
    %2 = vector.multi_reduction <add>, %1, %cst [1] : vector<2x24xf32> to vector<2xf32>
    %3 = vector.shape_cast %2 : vector<2xf32> to vector<2x1xf32>
    %4 = math.rsqrt %3 : vector<2x1xf32>
    %5 = vector.broadcast %4 : vector<2x1xf32> to vector<2x24xf32>
    %6 = arith.mulf %0, %5 : vector<2x24xf32>
    %c0_1 = arith.constant 0 : index
    %c0_2 = arith.constant 0 : index
    %7 = vector.load %arg4[%c0_1, %c0_2] : memref<27x24xf32, #tpu.memory_space<vmem>>, vector<24x24xf32>
    %cst_3 = arith.constant dense<0.000000e+00> : vector<2x24xf32>
    %8 = tpu.matmul %6, %7, %cst_3 {dimension_numbers = #tpu.dot_dimension_numbers<[1], [0], [0], [1], [0, 0, 1, 1], [], []>} : vector<2x24xf32>, vector<24x24xf32>, vector<2x24xf32> -> vector<2x24xf32>
    %c26 = arith.constant 26 : index
    %c0_4 = arith.constant 0 : index
    %9 = vector.load %arg4[%c26, %c0_4] : memref<27x24xf32, #tpu.memory_space<vmem>>, vector<1x24xf32>
    %10 = vector.broadcast %9 : vector<1x24xf32> to vector<2x24xf32>
    %11 = arith.addf %8, %10 : vector<2x24xf32>
    %c0_5 = arith.constant 0 : index
    %c0_6 = arith.constant 0 : index
    %12 = vector.load %arg2[%c0_5, %c0_6] : memref<2x2xf32, #tpu.memory_space<vmem>>, vector<2x2xf32>
    %13 = vector.extract_strided_slice %12 {offsets = [0, 0], sizes = [2, 1], strides = [1, 1]} : vector<2x2xf32> to vector<2x1xf32>
    %c24 = arith.constant 24 : index
    %c0_7 = arith.constant 0 : index
    %14 = vector.load %arg4[%c24, %c0_7] : memref<27x24xf32, #tpu.memory_space<vmem>>, vector<1x24xf32>
    %15 = vector.broadcast %13 : vector<2x1xf32> to vector<2x24xf32>
    %16 = vector.broadcast %14 : vector<1x24xf32> to vector<2x24xf32>
    %17 = arith.mulf %15, %16 : vector<2x24xf32>
    %18 = arith.addf %11, %17 : vector<2x24xf32>
    %19 = vector.extract_strided_slice %12 {offsets = [0, 1], sizes = [2, 1], strides = [1, 1]} : vector<2x2xf32> to vector<2x1xf32>
    %c25 = arith.constant 25 : index
    %c0_8 = arith.constant 0 : index
    %20 = vector.load %arg4[%c25, %c0_8] : memref<27x24xf32, #tpu.memory_space<vmem>>, vector<1x24xf32>
    %21 = vector.broadcast %19 : vector<2x1xf32> to vector<2x24xf32>
    %22 = vector.broadcast %20 : vector<1x24xf32> to vector<2x24xf32>
    %23 = arith.mulf %21, %22 : vector<2x24xf32>
    %24 = arith.addf %18, %23 : vector<2x24xf32>
    %c0_9 = arith.constant 0 : index
    %c0_10 = arith.constant 0 : index
    %25 = vector.load %arg1[%c0_9, %c0_10] : memref<2x24xf32, #tpu.memory_space<vmem>>, vector<2x24xf32>
    %26 = arith.addf %25, %24 : vector<2x24xf32>
    %c0_11 = arith.constant 0 : index
    %c0_12 = arith.constant 0 : index
    %27 = vector.load %arg5[%c0_11, %c0_12] : memref<2x24xf32, #tpu.memory_space<vmem>>, vector<2x24xf32>
    tpu.vector_store %arg5[%c0_11, %c0_12], %26 {strides = array<i32>} : memref<2x24xf32, #tpu.memory_space<vmem>>, vector<2x24xf32>,
    return
  }
  func.func @transform_0(%arg0: i32) -> (i32, i32) {
    %c0_i32 = arith.constant 0 : i32
    %c0_i32_0 = arith.constant 0 : i32
    return %arg0, %c0_i32 : i32, i32
  }
  func.func @transform_1(%arg0: i32) -> (i32, i32) {
    %c0_i32 = arith.constant 0 : i32
    %c0_i32_0 = arith.constant 0 : i32
    return %arg0, %c0_i32 : i32, i32
  }
  func.func @transform_2(%arg0: i32) -> (i32, i32) {
    %c0_i32 = arith.constant 0 : i32
    %c0_i32_0 = arith.constant 0 : i32
    return %arg0, %c0_i32 : i32, i32
  }
  func.func @transform_3(%arg0: i32) -> (i32, i32) {
    %c0_i32 = arith.constant 0 : i32
    %c0_i32_0 = arith.constant 0 : i32
    %c0_i32_1 = arith.constant 0 : i32
    return %c0_i32, %c0_i32_0 : i32, i32
  }
  func.func @transform_4(%arg0: i32) -> (i32, i32) {
    %c0_i32 = arith.constant 0 : i32
    %c0_i32_0 = arith.constant 0 : i32
    return %arg0, %c0_i32 : i32, i32
  }
}

</mosaic_0001>

<llo_original>
// kernel: tpu_custom_call.1
$region0: #{tpu_custom_call.1}
  #allocation0 [shape = 'u32[]', space=smem, size = 0x4, offset = 0x4, fixed_abs, tag = 'smem constant byte address 0x4 - core index']
  #allocation1 [shape = 'u32[144,128]{1,0:T(1,128)}', space=vmem, size = 0x12000, scoped, tag = 'internal scratch']
  %s0 = inlined_call_operand.vmem [shape: f32[2,24], index: 0, kind: input, shape index: {}]
  %s1 = inlined_call_operand.vmem [shape: f32[2,2], index: 1, kind: input, shape index: {}]
  %s2 = inlined_call_operand.vmem [shape: f32[2,24], index: 2, kind: input, shape index: {}]
  %s3 = inlined_call_operand.vmem [shape: f32[27,24], index: 3, kind: input, shape index: {}]
  %s4 = inlined_call_operand.hbm [shape: f32[2,24], index: 4, kind: output, shape index: {}]
  %s5 = sld [smem:[#allocation0]]
  $region26: #{tpu_custom_call.1} parent=0
    _
  %s7 = ssub.s32 1, %s5
  %s8 = scalar_select 0, %s7, %s5
  $region1: #{tpu_custom_call.1} parent=0
    #allocation2 [shape = 'u8[1024]{0}', space=vmem, size = 0x400, scoped, tag = 'output window, operand 0, single buffered']
    #allocation3 [shape = 's32[1]{0}', space=sflag, size = 0x4, scoped, tag = 'scoped memory for tpu_custom_call.1']
    %9 = vsyncpa [#allocation3], 0
    // Predicated region
    $region2: #{tpu_custom_call.1} parent=1 // pred_check
      _
    $region3: #{tpu_custom_call.1} parent=1 // pred_check_branch
      %11 = sbr.rel (0) target = $region5
    $region4: #{tpu_custom_call.1} parent=1 // pred_region
      _
    $region5: #{tpu_custom_call.1} parent=1 // pred_fallthru
      _
    // Predicated region
    $region6: #{tpu_custom_call.1} parent=1 // pred_check
      _
    $region7: #{tpu_custom_call.1} parent=1 // pred_check_branch
      %13 = sbr.rel (0) target = $region9
    $region8: #{tpu_custom_call.1} parent=1 // pred_region
      _
    $region9: #{tpu_custom_call.1} parent=1 // pred_fallthru
      _
    // Predicated region
    $region10: #{tpu_custom_call.1} parent=1 // pred_check
      _
    $region11: #{tpu_custom_call.1} parent=1 // pred_check_branch
      %15 = sbr.rel (0) target = $region13
    $region12: #{tpu_custom_call.1} parent=1 // pred_region
      _
    $region13: #{tpu_custom_call.1} parent=1 // pred_fallthru
      _
    // Predicated region
    $region14: #{tpu_custom_call.1} parent=1 // pred_check
      _
    $region15: #{tpu_custom_call.1} parent=1 // pred_check_branch
      %17 = sbr.rel (0) target = $region17
    $region16: #{tpu_custom_call.1} parent=1 // pred_region
      _
    $region17: #{tpu_custom_call.1} parent=1 // pred_fallthru
      _
    %v18 = vld [vmem:[%s2] sm:$0x3]
    %v19 = vmul.f32 %v18, %v18
    %vm20 = vcmask 189440
    %v21 = vsel %vm20, %v19, 0.0
    %22 = vadd.xlane.f32.xlu0 %v21
    %v23 = vpop.xlane.xlu0 %22
    %v24 = vrsqrt.pop %v23
    %v25 = vmul.f32 %v18, %v24
    %v26 = vld [vmem:[%s3] sm:$0xff]
    %v27 = vld [vmem:[%s3 + $0x8] sm:$0xff]
    %v28 = vld [vmem:[%s3 + $0x10] sm:$0xff]
    %v29 = vld [vmem:[%s3 + $0x1a] sm:$0x1]
    %v30 = vlaneseq
    %v31 = vshrl.u32 %v30, 7
    %v32 = vsub.s32 0, %v31
    %v33 = vrot.slane %v29, %v32
    %vm34 = vcmask 195584
    %v36 = vsel %vm34, %v25, 0
    %38 = vmatprep.subr.mxu0 0.0
    %39 = vmatpush1.msra.mxu0 %v26
    %40 = vmatprep.subr.mxu0 0.0
    %41 = vmatpush1.msra.mxu0 %v27
    %42 = vmatprep.subr.mxu0 0.0
    %43 = vmatpush1.msra.mxu0 %v28
    %44 = vmatprep.subr.mxu0 0.0
    %45 = vmatpush1.msra.mxu0 0.0
    %46 = vmatprep.subr.mxu0 0.0
    %47 = vmatpush1.msra.mxu0 0.0
    %48 = vmatprep.subr.mxu0 0.0
    %49 = vmatpush1.msra.mxu0 0.0
    %50 = vmatprep.subr.mxu0 0.0
    %51 = vmatpush1.msra.mxu0 0.0
    %52 = vmatprep.subr.mxu0 0.0
    %53 = vmatpush1.msra.mxu0 0.0
    %54 = vmatprep.subr.mxu0 0.0
    %55 = vmatpush1.msra.mxu0 0.0
    %56 = vmatprep.subr.mxu0 0.0
    %57 = vmatpush1.msra.mxu0 0.0
    %58 = vmatprep.subr.mxu0 0.0
    %59 = vmatpush1.msra.mxu0 0.0
    %60 = vmatprep.subr.mxu0 0.0
    %61 = vmatpush1.msra.mxu0 0.0
    %62 = vmatprep.subr.mxu0 0.0
    %63 = vmatpush1.msra.mxu0 0.0
    %64 = vmatprep.subr.mxu0 0.0
    %65 = vmatpush1.msra.mxu0 0.0
    %66 = vmatprep.subr.mxu0 0.0
    %67 = vmatpush1.msra.mxu0 0.0
    %68 = vmatprep.subr.mxu0 0.0
    %69 = vmatpush1.msra.mxu0 0.0
    %70 = vmatprep.subr.mxu0 0.0
    %71 = vmatpush1.msra.mxu0 0.0
    %72 = vmatprep.subr.mxu0 0.0
    %73 = vmatpush1.msra.mxu0 0.0
    %74 = vmatprep.subr.mxu0 0.0
    %75 = vmatpush1.msra.mxu0 0.0
    %76 = vmatprep.subr.mxu0 0.0
    %77 = vmatpush1.msra.mxu0 0.0
    %78 = vmatprep.subr.mxu0 0.0
    %79 = vmatpush1.msra.mxu0 0.0
    %80 = vmatprep.subr.mxu0 0.0
    %81 = vmatpush1.msra.mxu0 0.0
    %82 = vmatprep.subr.mxu0 0.0
    %83 = vmatpush1.msra.mxu0 0.0
    %84 = vmatprep.subr.mxu0 0.0
    %85 = vmatpush1.msra.mxu0 0.0
    %86 = vmatprep.subr.mxu0 0.0
    %87 = vmatpush1.msra.mxu0 0.0
    %88 = vmatprep.subr.mxu0 0.0
    %89 = vmatpush1.msra.mxu0 0.0
    %90 = vmatprep.subr.mxu0 0.0
    %91 = vmatpush1.msra.mxu0 0.0
    %92 = vmatprep.subr.mxu0 0.0
    %93 = vmatpush1.msra.mxu0 0.0
    %94 = vmatprep.subr.mxu0 0.0
    %95 = vmatpush1.msra.mxu0 0.0
    %96 = vmatprep.subr.mxu0 0.0
    %97 = vmatpush1.msra.mxu0 0.0
    %98 = vmatprep.subr.mxu0 0.0
    %99 = vmatpush1.msra.mxu0 0.0
    %100 = vmatprep.subr.mxu0 0.0
    %101 = vmatpush1.msra.mxu0 0.0
    %102 = vmatprep.mubr.f32.mxu0 0.0
    %103 = vmatmul.mubr.f32.gmra.mrb[0].mxu0 %v36
    %v104 = vpop.f32.mrb[0].mxu0
    %v105 = vadd.f32 %v33, %v104
    %v106 = vpop.f32.mrb[0].mxu0
    %107 = vdwg.mxu0
    %v108 = vld [vmem:[%s1] sm:$0x3]
    %v109 = vld [vmem:[%s3 + $0x18] sm:$0x1]
    %111 = vset.pattern.permute.xlu0 0
    %112 = vperm.xlu0 %111, %v108
    %v113 = vpop.permute.xlu0 %112
    %v115 = vlaneseq
    %v116 = vshrl.u32 %v115, 7
    %v117 = vsub.s32 0, %v116
    %v118 = vrot.slane %v109, %v117
    %v119 = vmul.f32 %v113, %v118
    %v120 = vadd.f32 %v105, %v119
    %v121 = vld [vmem:[%s3 + $0x19] sm:$0x1]
    %122 = vset.pattern.permute.xlu0 1
    %123 = vperm.xlu0 %122, %v108
    %v124 = vpop.permute.xlu0 %123
    %v126 = vlaneseq
    %v127 = vshrl.u32 %v126, 7
    %v128 = vsub.s32 0, %v127
    %v129 = vrot.slane %v121, %v128
    %v130 = vmul.f32 %v124, %v129
    %v131 = vadd.f32 %v120, %v130
    %v132 = vld [vmem:[%s0] sm:$0x3]
    %v133 = vadd.f32 %v132, %v131
    %134 = vst.msk [vmem:[#allocation2] sm:$0x3] %vm20, %v133
    // Predicated region
    $region18: #{tpu_custom_call.1} parent=1 // pred_check
      _
    $region19: #{tpu_custom_call.1} parent=1 // pred_check_branch
      %136 = sbr.rel (0) target = $region21
    $region20: #{tpu_custom_call.1} parent=1 // pred_region
      %s138 = ssub.s32 32, 32
      %139 = vsyncadd [#allocation3], %s138
      %s141 = sshll.u32 [#allocation2], 4
      %s142 = int_to_ptr.vmem [resolvable:$true] %s141
      %144 = dma.vmem_to_hbm [thread:$0]  %s142, 32, %s4, [#allocation3]
    $region21: #{tpu_custom_call.1} parent=1 // pred_fallthru
      _
    // Predicated region
    $region22: #{tpu_custom_call.1} parent=1 // pred_check
      _
    $region23: #{tpu_custom_call.1} parent=1 // pred_check_branch
      %146 = sbr.rel (0) target = $region25
    $region24: #{tpu_custom_call.1} parent=1 // pred_region
      %147 = dma.done [#allocation3], 32
    $region25: #{tpu_custom_call.1} parent=1 // pred_fallthru
      _
    %148 = vsyncpa [#allocation3], 1

</llo_original>
